<compile_context>
chip_gen: v7x
topology: tpu7x:2x2x1
jax: 0.10.0
libtpu: 0.0.40
codegen_flags: <defaults>
</compile_context>

<pallas_src>
import jax
import jax.numpy as jnp
from jax.experimental import pallas as pl
from jax.experimental.pallas import tpu as pltpu

LANE = 128      # TPU vreg lane width; only the OUTPUT feature dim is padded to this.
BN_EPS = 1e-5   # nn.BatchNorm1d default


def netwrapper_kernel(x_ref, wb_ref, bb_ref,
                      w1_ref, gamma_ref, beta_ref,
                      w2_ref, b2_ref, out_ref):
    # --- backbone up to the hook layer (layer=-2): hidden = relu(x @ Wb + bb) ---
    x = x_ref[...].astype(jnp.bfloat16)                           # in-kernel cast
    h0 = jnp.dot(x, wb_ref[...],
                 preferred_element_type=jnp.float32)              # [B, F] f32
    h0 = jnp.maximum(h0 + bb_ref[...], 0.0)

    # --- projector Linear1 (bias dropped: cancelled by train-mode BN mean) ---
    y1 = jnp.dot(h0.astype(jnp.bfloat16), w1_ref[...],
                 preferred_element_type=jnp.float32)              # [B, H] f32

    # --- BatchNorm1d (training-mode batch stats) folded to scale/shift -------
    mean = jnp.mean(y1, axis=0, keepdims=True)                    # [1, H]
    var = jnp.mean(jnp.square(y1 - mean), axis=0, keepdims=True)  # [1, H]
    scale = gamma_ref[...] * jax.lax.rsqrt(var + BN_EPS)          # EUP rsqrt
    shift = beta_ref[...] - mean * scale
    h1 = jnp.maximum(y1 * scale + shift, 0.0)                     # 2 VPU ops/elem

    # --- projector Linear2 (N padded to 128 -> lane-dense output store) ------
    out = jnp.dot(h1.astype(jnp.bfloat16), w2_ref[...],
                  preferred_element_type=jnp.float32)             # [B, Pp] f32
    out_ref[...] = out + b2_ref[...]


def _round_up(n, m):
    return ((n + m - 1) // m) * m


def _pad_last(a, n):
    pad = n - a.shape[-1]
    return a if pad == 0 else jnp.pad(a, [(0, 0)] * (a.ndim - 1) + [(0, pad)])


def prepare_params(wb, bb, w1, b1, gamma, beta, w2, b2):
    """Cast matmul weights to bf16; pad ONLY the output-facing dim to 128 lanes.

    b1 is intentionally discarded: training-mode BatchNorm1d subtracts the
    batch mean, which cancels any per-column constant exactly.
    """
    del b1
    pp = _round_up(w2.shape[1], LANE)

    wb_p = wb.astype(jnp.bfloat16)                   # [Din, F]  (unpadded)
    bb_p = bb.astype(jnp.float32)                    # [1, F]
    w1_p = w1.astype(jnp.bfloat16)                   # [F, H]    (unpadded)
    gamma_p = gamma.astype(jnp.float32)              # [1, H]
    beta_p = beta.astype(jnp.float32)                # [1, H]
    w2_p = _pad_last(w2, pp).astype(jnp.bfloat16)    # [H, Pp]   (zero cols -> zero out)
    b2_p = _pad_last(b2, pp).astype(jnp.float32)     # [1, Pp]
    return (wb_p, bb_p, w1_p, gamma_p, beta_p, w2_p, b2_p), w2.shape[1]


def netwrapper_forward(x, padded_params, projection_size):
    """Returns the padded [B, Pp] projection; columns >= projection_size are
    exact zeros.  The consumer should slice (or ignore the padding) in its own
    kernel rather than paying an extra XLA copy here."""
    del projection_size  # padding columns are exact zeros; no hot-path slice
    B = x.shape[0]
    x_flat = x.reshape(B, -1)                        # torch flatten(t); stays f32
    wb_p, bb_p, w1_p, gamma_p, beta_p, w2_p, b2_p = padded_params
    pp = w2_p.shape[1]

    vmem = pl.BlockSpec(memory_space=pltpu.MemorySpace.VMEM)
    return pl.pallas_call(
        netwrapper_kernel,
        out_shape=jax.ShapeDtypeStruct((B, pp), jnp.float32),
        in_specs=[vmem] * 8,
        out_specs=vmem,
        compiler_params=pltpu.CompilerParams(
            # Actual footprint is < 1 MiB (wb 128 KiB bf16 dominates); 4 MiB
            # leaves ample headroom on all of v5e/v6e/v7x.
            vmem_limit_bytes=4 * 1024 * 1024),
    )(x_flat, wb_p, bb_p, w1_p, gamma_p, beta_p, w2_p, b2_p)


def _linear_init(key, fan_in, fan_out):
    # PyTorch nn.Linear default: U(-1/sqrt(fan_in), 1/sqrt(fan_in)); stored [in, out].
    kw, kb = jax.random.split(key)
    bound = 1.0 / jnp.sqrt(float(fan_in))
    w = jax.random.uniform(kw, (fan_in, fan_out), jnp.float32, -bound, bound)
    b = jax.random.uniform(kb, (1, fan_out), jnp.float32, -bound, bound)
    return w, b


if __name__ == "__main__":
    # Small shapes consistent with the module's forward.
    B, C, H, W = 2, 4, 16, 16          # NCHW input
    Din = C * H * W                    # 1024
    FEAT = 64                          # backbone hidden width (hook output dim)
    PROJ_HID = 32                      # projection_hidden_size
    PROJ = 16                          # projection_size

    key = jax.random.PRNGKey(0)
    kx, kb1, kp1, kp2 = jax.random.split(key, 4)

    x = jax.random.normal(kx, (B, C, H, W), jnp.float32)

    # Backbone Linear (children[-3]); hook at layer=-2 (the ReLU after it).
    wb, bb = _linear_init(kb1, Din, FEAT)
    # Projector MLP: Linear(FEAT, PROJ_HID) -> BN1d -> ReLU -> Linear(PROJ_HID, PROJ)
    w1, b1 = _linear_init(kp1, FEAT, PROJ_HID)
    gamma = jnp.ones((1, PROJ_HID), jnp.float32)   # BatchNorm1d default affine params
    beta = jnp.zeros((1, PROJ_HID), jnp.float32)
    w2, b2 = _linear_init(kp2, PROJ_HID, PROJ)

    padded_params, proj = prepare_params(wb, bb, w1, b1, gamma, beta, w2, b2)

    out_padded = netwrapper_forward(x, padded_params, proj)
    jax.block_until_ready(out_padded)
    out = out_padded[:, :PROJ]                       # consumer-side slice (test only)

    # Padding columns must be exact zeros (zero w2 columns + zero b2 padding).
    assert out_padded.shape == (B, _round_up(PROJ, LANE))
    assert bool(jnp.all(out_padded[:, PROJ:] == 0.0)), "padding columns not zero"

    # --- Reference A: same math/precision as the kernel (bf16 matmuls, b1
    #     dropped, folded BN affine).  Must match tightly. ---
    xf16 = x.reshape(B, -1).astype(jnp.bfloat16)
    wb16 = wb.astype(jnp.bfloat16)
    w116 = w1.astype(jnp.bfloat16)
    w216 = w2.astype(jnp.bfloat16)
    h0 = jnp.maximum(
        jnp.dot(xf16, wb16, preferred_element_type=jnp.float32) + bb, 0.0)
    y1 = jnp.dot(h0.astype(jnp.bfloat16), w116, preferred_element_type=jnp.float32)
    m = jnp.mean(y1, axis=0, keepdims=True)
    v = jnp.mean(jnp.square(y1 - m), axis=0, keepdims=True)
    scale = gamma * jax.lax.rsqrt(v + BN_EPS)
    shift = beta - m * scale
    h1 = jnp.maximum(y1 * scale + shift, 0.0)
    ref_a = jnp.dot(h1.astype(jnp.bfloat16), w216,
                    preferred_element_type=jnp.float32) + b2

    # --- Reference B: faithful PyTorch-style math at the same matmul precision
    #     (b1 included, unfused BN).  Confirms dropping b1 / folding the BN
    #     affine are exact algebraic rewrites (differences are pure rounding;
    #     note: with B=2 the tiny batch variance amplifies bf16 rounding via
    #     rsqrt(var+eps), hence the looser tolerance). ---
    y1b = jnp.dot(h0.astype(jnp.bfloat16), w116,
                  preferred_element_type=jnp.float32) + b1
    mb = jnp.mean(y1b, axis=0, keepdims=True)
    vb = jnp.mean(jnp.square(y1b - mb), axis=0, keepdims=True)
    h1b = jnp.maximum((y1b - mb) / jnp.sqrt(vb + BN_EPS) * gamma + beta, 0.0)
    ref_b = jnp.dot(h1b.astype(jnp.bfloat16), w216,
                    preferred_element_type=jnp.float32) + b2

    assert out.shape == (B, PROJ)
    assert jnp.allclose(out, ref_a, atol=2e-3, rtol=2e-3), "mismatch vs same-math reference"
    assert jnp.allclose(out, ref_b, atol=3e-2, rtol=3e-2), "mismatch vs faithful reference"

    print("KERNEL_OK")
</pallas_src>

<mosaic_0001>
module attributes {stable_mosaic.version = 11 : i64} {
  func.func @netwrapper_kernel(%arg0: memref<2x1024xf32, #tpu.memory_space<vmem>>, %arg1: memref<1024x64xbf16, #tpu.memory_space<vmem>>, %arg2: memref<1x64xf32, #tpu.memory_space<vmem>>, %arg3: memref<64x32xbf16, #tpu.memory_space<vmem>>, %arg4: memref<1x32xf32, #tpu.memory_space<vmem>>, %arg5: memref<1x32xf32, #tpu.memory_space<vmem>>, %arg6: memref<32x128xbf16, #tpu.memory_space<vmem>>, %arg7: memref<1x128xf32, #tpu.memory_space<vmem>>, %arg8: memref<2x128xf32, #tpu.memory_space<vmem>>) attributes {dimension_semantics = [], scalar_prefetch = 0 : i64, scratch_operands = 0 : i64, tpu.core_type = #tpu.core_type<tc>} {
    %c0 = arith.constant 0 : index
    %c0_0 = arith.constant 0 : index
    %0 = vector.load %arg0[%c0, %c0_0] : memref<2x1024xf32, #tpu.memory_space<vmem>>, vector<2x1024xf32>
    %1 = arith.truncf %0 : vector<2x1024xf32> to vector<2x1024xbf16>
    %c0_1 = arith.constant 0 : index
    %c0_2 = arith.constant 0 : index
    %2 = vector.load %arg1[%c0_1, %c0_2] : memref<1024x64xbf16, #tpu.memory_space<vmem>>, vector<1024x64xbf16>
    %cst = arith.constant dense<0.000000e+00> : vector<2x64xf32>
    %3 = tpu.matmul %1, %2, %cst {dimension_numbers = #tpu.dot_dimension_numbers<[1], [0], [0], [1], [0, 0, 1, 1], [], []>} : vector<2x1024xbf16>, vector<1024x64xbf16>, vector<2x64xf32> -> vector<2x64xf32>
    %c0_3 = arith.constant 0 : index
    %c0_4 = arith.constant 0 : index
    %4 = vector.load %arg2[%c0_3, %c0_4] : memref<1x64xf32, #tpu.memory_space<vmem>>, vector<1x64xf32>
    %5 = vector.broadcast %4 : vector<1x64xf32> to vector<2x64xf32>
    %6 = arith.addf %3, %5 : vector<2x64xf32>
    %cst_5 = arith.constant 0.000000e+00 : f32
    %7 = vector.broadcast %cst_5 : f32 to vector<2x64xf32>
    %8 = arith.maximumf %6, %7 : vector<2x64xf32>
    %9 = arith.truncf %8 : vector<2x64xf32> to vector<2x64xbf16>
    %c0_6 = arith.constant 0 : index
    %c0_7 = arith.constant 0 : index
    %10 = vector.load %arg3[%c0_6, %c0_7] : memref<64x32xbf16, #tpu.memory_space<vmem>>, vector<64x32xbf16>
    %cst_8 = arith.constant dense<0.000000e+00> : vector<2x32xf32>
    %11 = tpu.matmul %9, %10, %cst_8 {dimension_numbers = #tpu.dot_dimension_numbers<[1], [0], [0], [1], [0, 0, 1, 1], [], []>} : vector<2x64xbf16>, vector<64x32xbf16>, vector<2x32xf32> -> vector<2x32xf32>
    %cst_9 = arith.constant dense<0.000000e+00> : vector<32xf32>
    %12 = vector.multi_reduction <add>, %11, %cst_9 [0] : vector<2x32xf32> to vector<32xf32>
    %13 = vector.shape_cast %12 : vector<32xf32> to vector<1x32xf32>
    %cst_10 = arith.constant 2.000000e+00 : f32
    %14 = vector.broadcast %cst_10 : f32 to vector<1x32xf32>
    %15 = arith.divf %13, %14 : vector<1x32xf32>
    %16 = vector.broadcast %15 : vector<1x32xf32> to vector<2x32xf32>
    %17 = arith.subf %11, %16 : vector<2x32xf32>
    %18 = arith.mulf %17, %17 : vector<2x32xf32>
    %cst_11 = arith.constant dense<0.000000e+00> : vector<32xf32>
    %19 = vector.multi_reduction <add>, %18, %cst_11 [0] : vector<2x32xf32> to vector<32xf32>
    %20 = vector.shape_cast %19 : vector<32xf32> to vector<1x32xf32>
    %cst_12 = arith.constant 2.000000e+00 : f32
    %21 = vector.broadcast %cst_12 : f32 to vector<1x32xf32>
    %22 = arith.divf %20, %21 : vector<1x32xf32>
    %c0_13 = arith.constant 0 : index
    %c0_14 = arith.constant 0 : index
    %23 = vector.load %arg4[%c0_13, %c0_14] : memref<1x32xf32, #tpu.memory_space<vmem>>, vector<1x32xf32>
    %cst_15 = arith.constant 9.99999974E-6 : f32
    %24 = vector.broadcast %cst_15 : f32 to vector<1x32xf32>
    %25 = arith.addf %22, %24 : vector<1x32xf32>
    %26 = math.rsqrt %25 : vector<1x32xf32>
    %27 = arith.mulf %23, %26 : vector<1x32xf32>
    %c0_16 = arith.constant 0 : index
    %c0_17 = arith.constant 0 : index
    %28 = vector.load %arg5[%c0_16, %c0_17] : memref<1x32xf32, #tpu.memory_space<vmem>>, vector<1x32xf32>
    %29 = arith.mulf %15, %27 : vector<1x32xf32>
    %30 = arith.subf %28, %29 : vector<1x32xf32>
    %31 = vector.broadcast %27 : vector<1x32xf32> to vector<2x32xf32>
    %32 = arith.mulf %11, %31 : vector<2x32xf32>
    %33 = vector.broadcast %30 : vector<1x32xf32> to vector<2x32xf32>
    %34 = arith.addf %32, %33 : vector<2x32xf32>
    %cst_18 = arith.constant 0.000000e+00 : f32
    %35 = vector.broadcast %cst_18 : f32 to vector<2x32xf32>
    %36 = arith.maximumf %34, %35 : vector<2x32xf32>
    %37 = arith.truncf %36 : vector<2x32xf32> to vector<2x32xbf16>
    %c0_19 = arith.constant 0 : index
    %c0_20 = arith.constant 0 : index
    %38 = vector.load %arg6[%c0_19, %c0_20] : memref<32x128xbf16, #tpu.memory_space<vmem>>, vector<32x128xbf16>
    %cst_21 = arith.constant dense<0.000000e+00> : vector<2x128xf32>
    %39 = tpu.matmul %37, %38, %cst_21 {dimension_numbers = #tpu.dot_dimension_numbers<[1], [0], [0], [1], [0, 0, 1, 1], [], []>} : vector<2x32xbf16>, vector<32x128xbf16>, vector<2x128xf32> -> vector<2x128xf32>
    %c0_22 = arith.constant 0 : index
    %c0_23 = arith.constant 0 : index
    %40 = vector.load %arg7[%c0_22, %c0_23] : memref<1x128xf32, #tpu.memory_space<vmem>>, vector<1x128xf32>
    %41 = vector.broadcast %40 : vector<1x128xf32> to vector<2x128xf32>
    %42 = arith.addf %39, %41 : vector<2x128xf32>
    %c0_24 = arith.constant 0 : index
    %c0_25 = arith.constant 0 : index
    %43 = vector.load %arg8[%c0_24, %c0_25] : memref<2x128xf32, #tpu.memory_space<vmem>>, vector<2x128xf32>
    tpu.vector_store %arg8[%c0_24, %c0_25], %42 {strides = array<i32>} : memref<2x128xf32, #tpu.memory_space<vmem>>, vector<2x128xf32>,
    return
  }
}

</mosaic_0001>

<llo_original>
// kernel: tpu_custom_call.1
$region0: #{tpu_custom_call.1}
  #allocation0 [shape = 'u32[]', space=smem, size = 0x4, offset = 0x4, fixed_abs, tag = 'smem constant byte address 0x4 - core index']
  #allocation1 [shape = 'u32[144,128]{1,0:T(1,128)}', space=vmem, size = 0x12000, scoped, tag = 'internal scratch']
  %s0 = inlined_call_operand.vmem [shape: f32[2,1024], index: 0, kind: input, shape index: {}]
  %s1 = inlined_call_operand.vmem [shape: bf16[1024,64], index: 1, kind: input, shape index: {}]
  %s2 = inlined_call_operand.vmem [shape: f32[1,64], index: 2, kind: input, shape index: {}]
  %s3 = inlined_call_operand.vmem [shape: bf16[64,32], index: 3, kind: input, shape index: {}]
  %s4 = inlined_call_operand.vmem [shape: f32[1,32], index: 4, kind: input, shape index: {}]
  %s5 = inlined_call_operand.vmem [shape: f32[1,32], index: 5, kind: input, shape index: {}]
  %s6 = inlined_call_operand.vmem [shape: bf16[32,128], index: 6, kind: input, shape index: {}]
  %s7 = inlined_call_operand.vmem [shape: f32[1,128], index: 7, kind: input, shape index: {}]
  %s8 = inlined_call_operand.hbm [shape: f32[2,128], index: 8, kind: output, shape index: {}]
  %s9 = sld [smem:[#allocation0]]
  $region42: #{tpu_custom_call.1} parent=0
    _
  %s11 = ssub.s32 1, %s9
  %s12 = scalar_select 0, %s11, %s9
  $region1: #{tpu_custom_call.1} parent=0
    #allocation2 [shape = 'u8[1024]{0}', space=vmem, size = 0x400, scoped, tag = 'output window, operand 0, single buffered']
    #allocation3 [shape = 's32[1]{0}', space=sflag, size = 0x4, scoped, tag = 'scoped memory for tpu_custom_call.1']
    %13 = vsyncpa [#allocation3], 0
    // Predicated region
    $region2: #{tpu_custom_call.1} parent=1 // pred_check
      _
    $region3: #{tpu_custom_call.1} parent=1 // pred_check_branch
      %15 = sbr.rel (0) target = $region5
    $region4: #{tpu_custom_call.1} parent=1 // pred_region
      _
    $region5: #{tpu_custom_call.1} parent=1 // pred_fallthru
      _
    // Predicated region
    $region6: #{tpu_custom_call.1} parent=1 // pred_check
      _
    $region7: #{tpu_custom_call.1} parent=1 // pred_check_branch
      %17 = sbr.rel (0) target = $region9
    $region8: #{tpu_custom_call.1} parent=1 // pred_region
      _
    $region9: #{tpu_custom_call.1} parent=1 // pred_fallthru
      _
    // Predicated region
    $region10: #{tpu_custom_call.1} parent=1 // pred_check
      _
    $region11: #{tpu_custom_call.1} parent=1 // pred_check_branch
      %19 = sbr.rel (0) target = $region13
    $region12: #{tpu_custom_call.1} parent=1 // pred_region
      _
    $region13: #{tpu_custom_call.1} parent=1 // pred_fallthru
      _
    // Predicated region
    $region14: #{tpu_custom_call.1} parent=1 // pred_check
      _
    $region15: #{tpu_custom_call.1} parent=1 // pred_check_branch
      %21 = sbr.rel (0) target = $region17
    $region16: #{tpu_custom_call.1} parent=1 // pred_region
      _
    $region17: #{tpu_custom_call.1} parent=1 // pred_fallthru
      _
    // Predicated region
    $region18: #{tpu_custom_call.1} parent=1 // pred_check
      _
    $region19: #{tpu_custom_call.1} parent=1 // pred_check_branch
      %23 = sbr.rel (0) target = $region21
    $region20: #{tpu_custom_call.1} parent=1 // pred_region
      _
    $region21: #{tpu_custom_call.1} parent=1 // pred_fallthru
      _
    // Predicated region
    $region22: #{tpu_custom_call.1} parent=1 // pred_check
      _
    $region23: #{tpu_custom_call.1} parent=1 // pred_check_branch
      %25 = sbr.rel (0) target = $region25
    $region24: #{tpu_custom_call.1} parent=1 // pred_region
      _
    $region25: #{tpu_custom_call.1} parent=1 // pred_fallthru
      _
    // Predicated region
    $region26: #{tpu_custom_call.1} parent=1 // pred_check
      _
    $region27: #{tpu_custom_call.1} parent=1 // pred_check_branch
      %27 = sbr.rel (0) target = $region29
    $region28: #{tpu_custom_call.1} parent=1 // pred_region
      _
    $region29: #{tpu_custom_call.1} parent=1 // pred_fallthru
      _
    // Predicated region
    $region30: #{tpu_custom_call.1} parent=1 // pred_check
      _
    $region31: #{tpu_custom_call.1} parent=1 // pred_check_branch
      %29 = sbr.rel (0) target = $region33
    $region32: #{tpu_custom_call.1} parent=1 // pred_region
      _
    $region33: #{tpu_custom_call.1} parent=1 // pred_fallthru
      _
    %v31 = vld [vmem:[%s0] sm:$0xff]
    %v32 = vld [vmem:[%s0 + $0x8] sm:$0xff]
    %v35 = vcombine.high %v31, %v31
    %v37 = vunpack.c.l.s4 1983009808
    %v38 = vunpack.c.0.s8 %v37
    %v39 = vlaneseq
    %v40 = vshrl.u32 %v39, 7
    %v41 = vsub.s32 %v38, %v40
    %v42 = vrot.slane %v31, %v41
    %v44 = vunpack.c.l.s4 1983009808
    %v45 = vunpack.c.0.s8 %v44
    %v46 = vlaneseq
    %v47 = vshrl.u32 %v46, 7
    %v48 = vsub.s32 %v45, %v47
    %v49 = vrot.slane %v35, %v48
    %v50 = vcombine.high %v42, %v42
    %v51 = vcombine.high %v49, %v49
    %v52 = vcombine.high %v32, %v32
    %v54 = vunpack.c.l.s4 1983009808
    %v55 = vunpack.c.0.s8 %v54
    %v56 = vlaneseq
    %v57 = vshrl.u32 %v56, 7
    %v58 = vsub.s32 %v55, %v57
    %v59 = vrot.slane %v32, %v58
    %v61 = vunpack.c.l.s4 1983009808
    %v62 = vunpack.c.0.s8 %v61
    %v63 = vlaneseq
    %v64 = vshrl.u32 %v63, 7
    %v65 = vsub.s32 %v62, %v64
    %v66 = vrot.slane %v52, %v65
    %v67 = vcombine.high %v59, %v59
    %v68 = vcombine.high %v66, %v66
    %v77 = vpack.c.bf16 %v42, %v42
    %v78 = vpack.c.bf16 %v50, %v50
    %v79 = vpack.c.bf16 %v49, %v49
    %v80 = vpack.c.bf16 %v51, %v51
    %v81 = vpack.c.bf16 %v59, %v59
    %v82 = vpack.c.bf16 %v67, %v67
    %v83 = vpack.c.bf16 %v66, %v66
    %v84 = vpack.c.bf16 %v68, %v68
    %v85 = vld [vmem:[%s1] sm:$0xf]
    %v86 = vld [vmem:[%s1 + $0x4] sm:$0xf]
    %v87 = vld [vmem:[%s1 + $0x8] sm:$0xf]
    %v88 = vld [vmem:[%s1 + $0xc] sm:$0xf]
    %v89 = vld [vmem:[%s1 + $0x10] sm:$0xf]
    %v90 = vld [vmem:[%s1 + $0x14] sm:$0xf]
    %v91 = vld [vmem:[%s1 + $0x18] sm:$0xf]
    %v92 = vld [vmem:[%s1 + $0x1c] sm:$0xf]
    %v93 = vld [vmem:[%s1 + $0x20] sm:$0xf]
    %v94 = vld [vmem:[%s1 + $0x24] sm:$0xf]
    %v95 = vld [vmem:[%s1 + $0x28] sm:$0xf]
    %v96 = vld [vmem:[%s1 + $0x2c] sm:$0xf]
    %v97 = vld [vmem:[%s1 + $0x30] sm:$0xf]
    %v98 = vld [vmem:[%s1 + $0x34] sm:$0xf]
    %v99 = vld [vmem:[%s1 + $0x38] sm:$0xf]
    %v100 = vld [vmem:[%s1 + $0x3c] sm:$0xf]
    %v101 = vld [vmem:[%s1 + $0x40] sm:$0xf]
    %v102 = vld [vmem:[%s1 + $0x44] sm:$0xf]
    %v103 = vld [vmem:[%s1 + $0x48] sm:$0xf]
    %v104 = vld [vmem:[%s1 + $0x4c] sm:$0xf]
    %v105 = vld [vmem:[%s1 + $0x50] sm:$0xf]
    %v106 = vld [vmem:[%s1 + $0x54] sm:$0xf]
    %v107 = vld [vmem:[%s1 + $0x58] sm:$0xf]
    %v108 = vld [vmem:[%s1 + $0x5c] sm:$0xf]
    %v109 = vld [vmem:[%s1 + $0x60] sm:$0xf]
    %v110 = vld [vmem:[%s1 + $0x64] sm:$0xf]
    %v111 = vld [vmem:[%s1 + $0x68] sm:$0xf]
    %v112 = vld [vmem:[%s1 + $0x6c] sm:$0xf]
    %v113 = vld [vmem:[%s1 + $0x70] sm:$0xf]
    %v114 = vld [vmem:[%s1 + $0x74] sm:$0xf]
    %v115 = vld [vmem:[%s1 + $0x78] sm:$0xf]
    %v116 = vld [vmem:[%s1 + $0x7c] sm:$0xf]
    %v117 = vld [vmem:[%s1 + $0x80] sm:$0xf]
    %v118 = vld [vmem:[%s1 + $0x84] sm:$0xf]
    %v119 = vld [vmem:[%s1 + $0x88] sm:$0xf]
    %v120 = vld [vmem:[%s1 + $0x8c] sm:$0xf]
    %v121 = vld [vmem:[%s1 + $0x90] sm:$0xf]
    %v122 = vld [vmem:[%s1 + $0x94] sm:$0xf]
    %v123 = vld [vmem:[%s1 + $0x98] sm:$0xf]
    %v124 = vld [vmem:[%s1 + $0x9c] sm:$0xf]
    %v125 = vld [vmem:[%s1 + $0xa0] sm:$0xf]
    %v126 = vld [vmem:[%s1 + $0xa4] sm:$0xf]
    %v127 = vld [vmem:[%s1 + $0xa8] sm:$0xf]
    %v128 = vld [vmem:[%s1 + $0xac] sm:$0xf]
    %v129 = vld [vmem:[%s1 + $0xb0] sm:$0xf]
    %v130 = vld [vmem:[%s1 + $0xb4] sm:$0xf]
    %v131 = vld [vmem:[%s1 + $0xb8] sm:$0xf]
    %v132 = vld [vmem:[%s1 + $0xbc] sm:$0xf]
    %v133 = vld [vmem:[%s1 + $0xc0] sm:$0xf]
    %v134 = vld [vmem:[%s1 + $0xc4] sm:$0xf]
    %v135 = vld [vmem:[%s1 + $0xc8] sm:$0xf]
    %v136 = vld [vmem:[%s1 + $0xcc] sm:$0xf]
    %v137 = vld [vmem:[%s1 + $0xd0] sm:$0xf]
    %v138 = vld [vmem:[%s1 + $0xd4] sm:$0xf]
    %v139 = vld [vmem:[%s1 + $0xd8] sm:$0xf]
    %v140 = vld [vmem:[%s1 + $0xdc] sm:$0xf]
    %v141 = vld [vmem:[%s1 + $0xe0] sm:$0xf]
    %v142 = vld [vmem:[%s1 + $0xe4] sm:$0xf]
    %v143 = vld [vmem:[%s1 + $0xe8] sm:$0xf]
    %v144 = vld [vmem:[%s1 + $0xec] sm:$0xf]
    %v145 = vld [vmem:[%s1 + $0xf0] sm:$0xf]
    %v146 = vld [vmem:[%s1 + $0xf4] sm:$0xf]
    %v147 = vld [vmem:[%s1 + $0xf8] sm:$0xf]
    %v148 = vld [vmem:[%s1 + $0xfc] sm:$0xf]
    %v149 = vld [vmem:[%s1 + $0x100] sm:$0xf]
    %v150 = vld [vmem:[%s1 + $0x104] sm:$0xf]
    %v151 = vld [vmem:[%s1 + $0x108] sm:$0xf]
    %v152 = vld [vmem:[%s1 + $0x10c] sm:$0xf]
    %v153 = vld [vmem:[%s1 + $0x110] sm:$0xf]
    %v154 = vld [vmem:[%s1 + $0x114] sm:$0xf]
    %v155 = vld [vmem:[%s1 + $0x118] sm:$0xf]
    %v156 = vld [vmem:[%s1 + $0x11c] sm:$0xf]
    %v157 = vld [vmem:[%s1 + $0x120] sm:$0xf]
    %v158 = vld [vmem:[%s1 + $0x124] sm:$0xf]
    %v159 = vld [vmem:[%s1 + $0x128] sm:$0xf]
    %v160 = vld [vmem:[%s1 + $0x12c] sm:$0xf]
    %v161 = vld [vmem:[%s1 + $0x130] sm:$0xf]
    %v162 = vld [vmem:[%s1 + $0x134] sm:$0xf]
    %v163 = vld [vmem:[%s1 + $0x138] sm:$0xf]
    %v164 = vld [vmem:[%s1 + $0x13c] sm:$0xf]
    %v165 = vld [vmem:[%s1 + $0x140] sm:$0xf]
    %v166 = vld [vmem:[%s1 + $0x144] sm:$0xf]
    %v167 = vld [vmem:[%s1 + $0x148] sm:$0xf]
    %v168 = vld [vmem:[%s1 + $0x14c] sm:$0xf]
    %v169 = vld [vmem:[%s1 + $0x150] sm:$0xf]
    %v170 = vld [vmem:[%s1 + $0x154] sm:$0xf]
    %v171 = vld [vmem:[%s1 + $0x158] sm:$0xf]
    %v172 = vld [vmem:[%s1 + $0x15c] sm:$0xf]
    %v173 = vld [vmem:[%s1 + $0x160] sm:$0xf]
    %v174 = vld [vmem:[%s1 + $0x164] sm:$0xf]
    %v175 = vld [vmem:[%s1 + $0x168] sm:$0xf]
    %v176 = vld [vmem:[%s1 + $0x16c] sm:$0xf]
    %v177 = vld [vmem:[%s1 + $0x170] sm:$0xf]
    %v178 = vld [vmem:[%s1 + $0x174] sm:$0xf]
    %v179 = vld [vmem:[%s1 + $0x178] sm:$0xf]
    %v180 = vld [vmem:[%s1 + $0x17c] sm:$0xf]
    %v181 = vld [vmem:[%s1 + $0x180] sm:$0xf]
    %v182 = vld [vmem:[%s1 + $0x184] sm:$0xf]
    %v183 = vld [vmem:[%s1 + $0x188] sm:$0xf]
    %v184 = vld [vmem:[%s1 + $0x18c] sm:$0xf]
    %v185 = vld [vmem:[%s1 + $0x190] sm:$0xf]
    %v186 = vld [vmem:[%s1 + $0x194] sm:$0xf]
    %v187 = vld [vmem:[%s1 + $0x198] sm:$0xf]
    %v188 = vld [vmem:[%s1 + $0x19c] sm:$0xf]
    %v189 = vld [vmem:[%s1 + $0x1a0] sm:$0xf]
    %v190 = vld [vmem:[%s1 + $0x1a4] sm:$0xf]
    %v191 = vld [vmem:[%s1 + $0x1a8] sm:$0xf]
    %v192 = vld [vmem:[%s1 + $0x1ac] sm:$0xf]
    %v193 = vld [vmem:[%s1 + $0x1b0] sm:$0xf]
    %v194 = vld [vmem:[%s1 + $0x1b4] sm:$0xf]
    %v195 = vld [vmem:[%s1 + $0x1b8] sm:$0xf]
    %v196 = vld [vmem:[%s1 + $0x1bc] sm:$0xf]
    %v197 = vld [vmem:[%s1 + $0x1c0] sm:$0xf]
    %v198 = vld [vmem:[%s1 + $0x1c4] sm:$0xf]
    %v199 = vld [vmem:[%s1 + $0x1c8] sm:$0xf]
    %v200 = vld [vmem:[%s1 + $0x1cc] sm:$0xf]
    %v201 = vld [vmem:[%s1 + $0x1d0] sm:$0xf]
    %v202 = vld [vmem:[%s1 + $0x1d4] sm:$0xf]
    %v203 = vld [vmem:[%s1 + $0x1d8] sm:$0xf]
    %v204 = vld [vmem:[%s1 + $0x1dc] sm:$0xf]
    %v205 = vld [vmem:[%s1 + $0x1e0] sm:$0xf]
    %v206 = vld [vmem:[%s1 + $0x1e4] sm:$0xf]
    %v207 = vld [vmem:[%s1 + $0x1e8] sm:$0xf]
    %v208 = vld [vmem:[%s1 + $0x1ec] sm:$0xf]
    %v209 = vld [vmem:[%s1 + $0x1f0] sm:$0xf]
    %v210 = vld [vmem:[%s1 + $0x1f4] sm:$0xf]
    %v211 = vld [vmem:[%s1 + $0x1f8] sm:$0xf]
    %v212 = vld [vmem:[%s1 + $0x1fc] sm:$0xf]
    %v213 = vld [vmem:[%s2] sm:$0x1]
    %v215 = vlaneseq
    %v216 = vshrl.u32 %v215, 7
    %v217 = vsub.s32 0, %v216
    %v218 = vrot.slane %v213, %v217
    %v348 = vunpack.c.l.b16 %v85
    %v349 = vunpack.c.l.b16 %v86
    %v350 = vunpack.c.l.b16 %v87
    %v351 = vunpack.c.l.b16 %v88
    %v352 = vunpack.c.l.b16 %v89
    %v353 = vunpack.c.l.b16 %v90
    %v354 = vunpack.c.l.b16 %v91
    %v355 = vunpack.c.l.b16 %v92
    %v356 = vunpack.c.l.b16 %v93
    %v357 = vunpack.c.l.b16 %v94
    %v358 = vunpack.c.l.b16 %v95
    %v359 = vunpack.c.l.b16 %v96
    %v360 = vunpack.c.l.b16 %v97
    %v361 = vunpack.c.l.b16 %v98
    %v362 = vunpack.c.l.b16 %v99
    %v363 = vunpack.c.l.b16 %v100
    %v364 = vunpack.c.l.b16 %v101
    %v365 = vunpack.c.l.b16 %v102
    %v366 = vunpack.c.l.b16 %v103
    %v367 = vunpack.c.l.b16 %v104
    %v368 = vunpack.c.l.b16 %v105
    %v369 = vunpack.c.l.b16 %v106
    %v370 = vunpack.c.l.b16 %v107
    %v371 = vunpack.c.l.b16 %v108
    %v372 = vunpack.c.l.b16 %v109
    %v373 = vunpack.c.l.b16 %v110
    %v374 = vunpack.c.l.b16 %v111
    %v375 = vunpack.c.l.b16 %v112
    %v376 = vunpack.c.l.b16 %v113
    %v377 = vunpack.c.l.b16 %v114
    %v378 = vunpack.c.l.b16 %v115
    %v379 = vunpack.c.l.b16 %v116
    %v380 = vunpack.c.l.b16 %v117
    %v381 = vunpack.c.l.b16 %v118
    %v382 = vunpack.c.l.b16 %v119
    %v383 = vunpack.c.l.b16 %v120
    %v384 = vunpack.c.l.b16 %v121
    %v385 = vunpack.c.l.b16 %v122
    %v386 = vunpack.c.l.b16 %v123
    %v387 = vunpack.c.l.b16 %v124
    %v388 = vunpack.c.l.b16 %v125
    %v389 = vunpack.c.l.b16 %v126
    %v390 = vunpack.c.l.b16 %v127
    %v391 = vunpack.c.l.b16 %v128
    %v392 = vunpack.c.l.b16 %v129
    %v393 = vunpack.c.l.b16 %v130
    %v394 = vunpack.c.l.b16 %v131
    %v395 = vunpack.c.l.b16 %v132
    %v396 = vunpack.c.l.b16 %v133
    %v397 = vunpack.c.l.b16 %v134
    %v398 = vunpack.c.l.b16 %v135
    %v399 = vunpack.c.l.b16 %v136
    %v400 = vunpack.c.l.b16 %v137
    %v401 = vunpack.c.l.b16 %v138
    %v402 = vunpack.c.l.b16 %v139
    %v403 = vunpack.c.l.b16 %v140
    %v404 = vunpack.c.l.b16 %v141
    %v405 = vunpack.c.l.b16 %v142
    %v406 = vunpack.c.l.b16 %v143
    %v407 = vunpack.c.l.b16 %v144
    %v408 = vunpack.c.l.b16 %v145
    %v409 = vunpack.c.l.b16 %v146
    %v410 = vunpack.c.l.b16 %v147
    %v411 = vunpack.c.l.b16 %v148
    %v412 = vunpack.c.l.b16 %v149
    %v413 = vunpack.c.l.b16 %v150
    %v414 = vunpack.c.l.b16 %v151
    %v415 = vunpack.c.l.b16 %v152
    %v416 = vunpack.c.l.b16 %v153
    %v417 = vunpack.c.l.b16 %v154
    %v418 = vunpack.c.l.b16 %v155
    %v419 = vunpack.c.l.b16 %v156
    %v420 = vunpack.c.l.b16 %v157
    %v421 = vunpack.c.l.b16 %v158
    %v422 = vunpack.c.l.b16 %v159
    %v423 = vunpack.c.l.b16 %v160
    %v424 = vunpack.c.l.b16 %v161
    %v425 = vunpack.c.l.b16 %v162
    %v426 = vunpack.c.l.b16 %v163
    %v427 = vunpack.c.l.b16 %v164
    %v428 = vunpack.c.l.b16 %v165
    %v429 = vunpack.c.l.b16 %v166
    %v430 = vunpack.c.l.b16 %v167
    %v431 = vunpack.c.l.b16 %v168
    %v432 = vunpack.c.l.b16 %v169
    %v433 = vunpack.c.l.b16 %v170
    %v434 = vunpack.c.l.b16 %v171
    %v435 = vunpack.c.l.b16 %v172
    %v436 = vunpack.c.l.b16 %v173
    %v437 = vunpack.c.l.b16 %v174
    %v438 = vunpack.c.l.b16 %v175
    %v439 = vunpack.c.l.b16 %v176
    %v440 = vunpack.c.l.b16 %v177
    %v441 = vunpack.c.l.b16 %v178
    %v442 = vunpack.c.l.b16 %v179
    %v443 = vunpack.c.l.b16 %v180
    %v444 = vunpack.c.l.b16 %v181
    %v445 = vunpack.c.l.b16 %v182
    %v446 = vunpack.c.l.b16 %v183
    %v447 = vunpack.c.l.b16 %v184
    %v448 = vunpack.c.l.b16 %v185
    %v449 = vunpack.c.l.b16 %v186
    %v450 = vunpack.c.l.b16 %v187
    %v451 = vunpack.c.l.b16 %v188
    %v452 = vunpack.c.l.b16 %v189
    %v453 = vunpack.c.l.b16 %v190
    %v454 = vunpack.c.l.b16 %v191
    %v455 = vunpack.c.l.b16 %v192
    %v456 = vunpack.c.l.b16 %v193
    %v457 = vunpack.c.l.b16 %v194
    %v458 = vunpack.c.l.b16 %v195
    %v459 = vunpack.c.l.b16 %v196
    %v460 = vunpack.c.l.b16 %v197
    %v461 = vunpack.c.l.b16 %v198
    %v462 = vunpack.c.l.b16 %v199
    %v463 = vunpack.c.l.b16 %v200
    %v464 = vunpack.c.l.b16 %v201
    %v465 = vunpack.c.l.b16 %v202
    %v466 = vunpack.c.l.b16 %v203
    %v467 = vunpack.c.l.b16 %v204
    %v468 = vunpack.c.l.b16 %v205
    %v469 = vunpack.c.l.b16 %v206
    %v470 = vunpack.c.l.b16 %v207
    %v471 = vunpack.c.l.b16 %v208
    %v472 = vunpack.c.l.b16 %v209
    %v473 = vunpack.c.l.b16 %v210
    %v474 = vunpack.c.l.b16 %v211
    %v475 = vunpack.c.l.b16 %v212
    %v476 = vpack.c.b16 %v349, %v348
    %v477 = vpack.c.b16 %v351, %v350
    %v478 = vpack.c.b16 %v353, %v352
    %v479 = vpack.c.b16 %v355, %v354
    %v480 = vpack.c.b16 %v357, %v356
    %v481 = vpack.c.b16 %v359, %v358
    %v482 = vpack.c.b16 %v361, %v360
    %v483 = vpack.c.b16 %v363, %v362
    %v484 = vpack.c.b16 %v365, %v364
    %v485 = vpack.c.b16 %v367, %v366
    %v486 = vpack.c.b16 %v369, %v368
    %v487 = vpack.c.b16 %v371, %v370
    %v488 = vpack.c.b16 %v373, %v372
    %v489 = vpack.c.b16 %v375, %v374
    %v490 = vpack.c.b16 %v377, %v376
    %v491 = vpack.c.b16 %v379, %v378
    %v492 = vpack.c.b16 %v381, %v380
    %v493 = vpack.c.b16 %v383, %v382
    %v494 = vpack.c.b16 %v385, %v384
    %v495 = vpack.c.b16 %v387, %v386
    %v496 = vpack.c.b16 %v389, %v388
    %v497 = vpack.c.b16 %v391, %v390
    %v498 = vpack.c.b16 %v393, %v392
    %v499 = vpack.c.b16 %v395, %v394
    %v500 = vpack.c.b16 %v397, %v396
    %v501 = vpack.c.b16 %v399, %v398
    %v502 = vpack.c.b16 %v401, %v400
    %v503 = vpack.c.b16 %v403, %v402
    %v504 = vpack.c.b16 %v405, %v404
    %v505 = vpack.c.b16 %v407, %v406
    %v506 = vpack.c.b16 %v409, %v408
    %v507 = vpack.c.b16 %v411, %v410
    %v508 = vpack.c.b16 %v413, %v412
    %v509 = vpack.c.b16 %v415, %v414
    %v510 = vpack.c.b16 %v417, %v416
    %v511 = vpack.c.b16 %v419, %v418
    %v512 = vpack.c.b16 %v421, %v420
    %v513 = vpack.c.b16 %v423, %v422
    %v514 = vpack.c.b16 %v425, %v424
    %v515 = vpack.c.b16 %v427, %v426
    %v516 = vpack.c.b16 %v429, %v428
    %v517 = vpack.c.b16 %v431, %v430
    %v518 = vpack.c.b16 %v433, %v432
    %v519 = vpack.c.b16 %v435, %v434
    %v520 = vpack.c.b16 %v437, %v436
    %v521 = vpack.c.b16 %v439, %v438
    %v522 = vpack.c.b16 %v441, %v440
    %v523 = vpack.c.b16 %v443, %v442
    %v524 = vpack.c.b16 %v445, %v444
    %v525 = vpack.c.b16 %v447, %v446
    %v526 = vpack.c.b16 %v449, %v448
    %v527 = vpack.c.b16 %v451, %v450
    %v528 = vpack.c.b16 %v453, %v452
    %v529 = vpack.c.b16 %v455, %v454
    %v530 = vpack.c.b16 %v457, %v456
    %v531 = vpack.c.b16 %v459, %v458
    %v532 = vpack.c.b16 %v461, %v460
    %v533 = vpack.c.b16 %v463, %v462
    %v534 = vpack.c.b16 %v465, %v464
    %v535 = vpack.c.b16 %v467, %v466
    %v536 = vpack.c.b16 %v469, %v468
    %v537 = vpack.c.b16 %v471, %v470
    %v538 = vpack.c.b16 %v473, %v472
    %v539 = vpack.c.b16 %v475, %v474
    %604 = vmatprep.subr.bf16.mxu0 0
    %605 = vmatpush1.bf16.msra.mxu0 %v476
    %606 = vmatprep.subr.bf16.mxu0 0
    %607 = vmatpush1.bf16.msra.mxu0 %v477
    %608 = vmatprep.subr.bf16.mxu0 0
    %609 = vmatpush1.bf16.msra.mxu0 %v478
    %610 = vmatprep.subr.bf16.mxu0 0
    %611 = vmatpush1.bf16.msra.mxu0 %v479
    %612 = vmatprep.subr.bf16.mxu0 0
    %613 = vmatpush1.bf16.msra.mxu0 %v480
    %614 = vmatprep.subr.bf16.mxu0 0
    %615 = vmatpush1.bf16.msra.mxu0 %v481
    %616 = vmatprep.subr.bf16.mxu0 0
    %617 = vmatpush1.bf16.msra.mxu0 %v482
    %618 = vmatprep.subr.bf16.mxu0 0
    %619 = vmatpush1.bf16.msra.mxu0 %v483
    %620 = vmatprep.subr.bf16.mxu0 0
    %621 = vmatpush1.bf16.msra.mxu0 %v484
    %622 = vmatprep.subr.bf16.mxu0 0
    %623 = vmatpush1.bf16.msra.mxu0 %v485
    %624 = vmatprep.subr.bf16.mxu0 0
    %625 = vmatpush1.bf16.msra.mxu0 %v486
    %626 = vmatprep.subr.bf16.mxu0 0
    %627 = vmatpush1.bf16.msra.mxu0 %v487
    %628 = vmatprep.subr.bf16.mxu0 0
    %629 = vmatpush1.bf16.msra.mxu0 %v488
    %630 = vmatprep.subr.bf16.mxu0 0
    %631 = vmatpush1.bf16.msra.mxu0 %v489
    %632 = vmatprep.subr.bf16.mxu0 0
    %633 = vmatpush1.bf16.msra.mxu0 %v490
    %634 = vmatprep.subr.bf16.mxu0 0
    %635 = vmatpush1.bf16.msra.mxu0 %v491
    %636 = vmatprep.mubr.bf16.mxu0 %v78
    %637 = vmatmul.mubr.bf16.gmra.mrb[0].mxu0 %v77
    %v638 = vpop.f32.mrb[0].mxu0
    %v639 = vadd.f32 %v218, %v638
    %v640 = vpop.f32.mrb[0].mxu0
    %v641 = vpop.f32.mrb[0].mxu0
    %v642 = vpop.f32.mrb[0].mxu0
    %643 = vdwg.mxu0
    %644 = vmatprep.subr.bf16.mxu0 0
    %645 = vmatpush1.bf16.msra.mxu0 %v492
    %646 = vmatprep.subr.bf16.mxu0 0
    %647 = vmatpush1.bf16.msra.mxu0 %v493
    %648 = vmatprep.subr.bf16.mxu0 0
    %649 = vmatpush1.bf16.msra.mxu0 %v494
    %650 = vmatprep.subr.bf16.mxu0 0
    %651 = vmatpush1.bf16.msra.mxu0 %v495
    %652 = vmatprep.subr.bf16.mxu0 0
    %653 = vmatpush1.bf16.msra.mxu0 %v496
    %654 = vmatprep.subr.bf16.mxu0 0
    %655 = vmatpush1.bf16.msra.mxu0 %v497
    %656 = vmatprep.subr.bf16.mxu0 0
    %657 = vmatpush1.bf16.msra.mxu0 %v498
    %658 = vmatprep.subr.bf16.mxu0 0
    %659 = vmatpush1.bf16.msra.mxu0 %v499
    %660 = vmatprep.subr.bf16.mxu0 0
    %661 = vmatpush1.bf16.msra.mxu0 %v500
    %662 = vmatprep.subr.bf16.mxu0 0
    %663 = vmatpush1.bf16.msra.mxu0 %v501
    %664 = vmatprep.subr.bf16.mxu0 0
    %665 = vmatpush1.bf16.msra.mxu0 %v502
    %666 = vmatprep.subr.bf16.mxu0 0
    %667 = vmatpush1.bf16.msra.mxu0 %v503
    %668 = vmatprep.subr.bf16.mxu0 0
    %669 = vmatpush1.bf16.msra.mxu0 %v504
    %670 = vmatprep.subr.bf16.mxu0 0
    %671 = vmatpush1.bf16.msra.mxu0 %v505
    %672 = vmatprep.subr.bf16.mxu0 0
    %673 = vmatpush1.bf16.msra.mxu0 %v506
    %674 = vmatprep.subr.bf16.mxu0 0
    %675 = vmatpush1.bf16.msra.mxu0 %v507
    %676 = vmatprep.mubr.bf16.mxu0 %v80
    %677 = vmatmul.mubr.bf16.gmra.mrb[0].mxu0 %v79
    %v678 = vpop.f32.mrb[0].mxu0
    %v679 = vadd.f32 %v639, %v678
    %v680 = vpop.f32.mrb[0].mxu0
    %v681 = vpop.f32.mrb[0].mxu0
    %v682 = vpop.f32.mrb[0].mxu0
    %683 = vdwg.mxu0
    %684 = vmatprep.subr.bf16.mxu0 0
    %685 = vmatpush1.bf16.msra.mxu0 %v508
    %686 = vmatprep.subr.bf16.mxu0 0
    %687 = vmatpush1.bf16.msra.mxu0 %v509
    %688 = vmatprep.subr.bf16.mxu0 0
    %689 = vmatpush1.bf16.msra.mxu0 %v510
    %690 = vmatprep.subr.bf16.mxu0 0
    %691 = vmatpush1.bf16.msra.mxu0 %v511
    %692 = vmatprep.subr.bf16.mxu0 0
    %693 = vmatpush1.bf16.msra.mxu0 %v512
    %694 = vmatprep.subr.bf16.mxu0 0
    %695 = vmatpush1.bf16.msra.mxu0 %v513
    %696 = vmatprep.subr.bf16.mxu0 0
    %697 = vmatpush1.bf16.msra.mxu0 %v514
    %698 = vmatprep.subr.bf16.mxu0 0
    %699 = vmatpush1.bf16.msra.mxu0 %v515
    %700 = vmatprep.subr.bf16.mxu0 0
    %701 = vmatpush1.bf16.msra.mxu0 %v516
    %702 = vmatprep.subr.bf16.mxu0 0
    %703 = vmatpush1.bf16.msra.mxu0 %v517
    %704 = vmatprep.subr.bf16.mxu0 0
    %705 = vmatpush1.bf16.msra.mxu0 %v518
    %706 = vmatprep.subr.bf16.mxu0 0
    %707 = vmatpush1.bf16.msra.mxu0 %v519
    %708 = vmatprep.subr.bf16.mxu0 0
    %709 = vmatpush1.bf16.msra.mxu0 %v520
    %710 = vmatprep.subr.bf16.mxu0 0
    %711 = vmatpush1.bf16.msra.mxu0 %v521
    %712 = vmatprep.subr.bf16.mxu0 0
    %713 = vmatpush1.bf16.msra.mxu0 %v522
    %714 = vmatprep.subr.bf16.mxu0 0
    %715 = vmatpush1.bf16.msra.mxu0 %v523
    %716 = vmatprep.mubr.bf16.mxu0 %v82
    %717 = vmatmul.mubr.bf16.gmra.mrb[0].mxu0 %v81
    %v718 = vpop.f32.mrb[0].mxu0
    %v719 = vadd.f32 %v679, %v718
    %v720 = vpop.f32.mrb[0].mxu0
    %v721 = vpop.f32.mrb[0].mxu0
    %v722 = vpop.f32.mrb[0].mxu0
    %723 = vdwg.mxu0
    %724 = vmatprep.subr.bf16.mxu0 0
    %725 = vmatpush1.bf16.msra.mxu0 %v524
    %726 = vmatprep.subr.bf16.mxu0 0
    %727 = vmatpush1.bf16.msra.mxu0 %v525
    %728 = vmatprep.subr.bf16.mxu0 0
    %729 = vmatpush1.bf16.msra.mxu0 %v526
    %730 = vmatprep.subr.bf16.mxu0 0
    %731 = vmatpush1.bf16.msra.mxu0 %v527
    %732 = vmatprep.subr.bf16.mxu0 0
    %733 = vmatpush1.bf16.msra.mxu0 %v528
    %734 = vmatprep.subr.bf16.mxu0 0
    %735 = vmatpush1.bf16.msra.mxu0 %v529
    %736 = vmatprep.subr.bf16.mxu0 0
    %737 = vmatpush1.bf16.msra.mxu0 %v530
    %738 = vmatprep.subr.bf16.mxu0 0
    %739 = vmatpush1.bf16.msra.mxu0 %v531
    %740 = vmatprep.subr.bf16.mxu0 0
    %741 = vmatpush1.bf16.msra.mxu0 %v532
    %742 = vmatprep.subr.bf16.mxu0 0
    %743 = vmatpush1.bf16.msra.mxu0 %v533
    %744 = vmatprep.subr.bf16.mxu0 0
    %745 = vmatpush1.bf16.msra.mxu0 %v534
    %746 = vmatprep.subr.bf16.mxu0 0
    %747 = vmatpush1.bf16.msra.mxu0 %v535
    %748 = vmatprep.subr.bf16.mxu0 0
    %749 = vmatpush1.bf16.msra.mxu0 %v536
    %750 = vmatprep.subr.bf16.mxu0 0
    %751 = vmatpush1.bf16.msra.mxu0 %v537
    %752 = vmatprep.subr.bf16.mxu0 0
    %753 = vmatpush1.bf16.msra.mxu0 %v538
    %754 = vmatprep.subr.bf16.mxu0 0
    %755 = vmatpush1.bf16.msra.mxu0 %v539
    %756 = vmatprep.mubr.bf16.mxu0 %v84
    %757 = vmatmul.mubr.bf16.gmra.mrb[0].mxu0 %v83
    %v758 = vpop.f32.mrb[0].mxu0
    %v759 = vadd.f32 %v719, %v758
    %v760 = vpop.f32.mrb[0].mxu0
    %v761 = vpop.f32.mrb[0].mxu0
    %v762 = vpop.f32.mrb[0].mxu0
    %763 = vdwg.mxu0
    %v764 = vmax.f32 %v759, 0.0
    %v765 = vpack.c.bf16 %v764, %v764
    %v766 = vld [vmem:[%s3] sm:$0xf]
    %v767 = vld [vmem:[%s3 + $0x4] sm:$0xf]
    %v768 = vld [vmem:[%s3 + $0x8] sm:$0xf]
    %v769 = vld [vmem:[%s3 + $0xc] sm:$0xf]
    %v770 = vld [vmem:[%s3 + $0x10] sm:$0xf]
    %v771 = vld [vmem:[%s3 + $0x14] sm:$0xf]
    %v772 = vld [vmem:[%s3 + $0x18] sm:$0xf]
    %v773 = vld [vmem:[%s3 + $0x1c] sm:$0xf]
    %v782 = vunpack.c.l.b16 %v766
    %v783 = vunpack.c.l.b16 %v767
    %v784 = vunpack.c.l.b16 %v768
    %v785 = vunpack.c.l.b16 %v769
    %v786 = vunpack.c.l.b16 %v770
    %v787 = vunpack.c.l.b16 %v771
    %v788 = vunpack.c.l.b16 %v772
    %v789 = vunpack.c.l.b16 %v773
    %v790 = vpack.c.b16 %v783, %v782
    %v791 = vpack.c.b16 %v785, %v784
    %v792 = vpack.c.b16 %v787, %v786
    %v793 = vpack.c.b16 %v789, %v788
    %vm798 = vcmask 523264
    %v800 = vsel %vm798, %v765, 0
    %802 = vmatprep.subr.bf16.mxu0 0
    %803 = vmatpush1.bf16.msra.mxu0 %v790
    %804 = vmatprep.subr.bf16.mxu0 0
    %805 = vmatpush1.bf16.msra.mxu0 %v791
    %806 = vmatprep.subr.bf16.mxu0 0
    %807 = vmatpush1.bf16.msra.mxu0 %v792
    %808 = vmatprep.subr.bf16.mxu0 0
    %809 = vmatpush1.bf16.msra.mxu0 %v793
    %810 = vmatprep.subr.bf16.mxu0 0
    %811 = vmatpush1.bf16.msra.mxu0 0
    %812 = vmatprep.subr.bf16.mxu0 0
    %813 = vmatpush1.bf16.msra.mxu0 0
    %814 = vmatprep.subr.bf16.mxu0 0
    %815 = vmatpush1.bf16.msra.mxu0 0
    %816 = vmatprep.subr.bf16.mxu0 0
    %817 = vmatpush1.bf16.msra.mxu0 0
    %818 = vmatprep.subr.bf16.mxu0 0
    %819 = vmatpush1.bf16.msra.mxu0 0
    %820 = vmatprep.subr.bf16.mxu0 0
    %821 = vmatpush1.bf16.msra.mxu0 0
    %822 = vmatprep.subr.bf16.mxu0 0
    %823 = vmatpush1.bf16.msra.mxu0 0
    %824 = vmatprep.subr.bf16.mxu0 0
    %825 = vmatpush1.bf16.msra.mxu0 0
    %826 = vmatprep.subr.bf16.mxu0 0
    %827 = vmatpush1.bf16.msra.mxu0 0
    %828 = vmatprep.subr.bf16.mxu0 0
    %829 = vmatpush1.bf16.msra.mxu0 0
    %830 = vmatprep.subr.bf16.mxu0 0
    %831 = vmatpush1.bf16.msra.mxu0 0
    %832 = vmatprep.subr.bf16.mxu0 0
    %833 = vmatpush1.bf16.msra.mxu0 0
    %834 = vmatprep.mubr.bf16.mxu0 0
    %835 = vmatmul.mubr.bf16.gmra.mrb[0].mxu0 %v800
    %v836 = vpop.f32.mrb[0].mxu0
    %v837 = vadd.f32 0.0, %v836
    %v838 = vpop.f32.mrb[0].mxu0
    %v839 = vpop.f32.mrb[0].mxu0
    %v840 = vpop.f32.mrb[0].mxu0
    %841 = vdwg.mxu0
    %vm842 = vcmask 254976
    %v843 = vsel %vm842, %v837, 0.0
    %v844 = vrot.slane %v843, 4
    %v845 = vadd.f32 %v843, %v844
    %v846 = vrot.slane %v845, 2
    %v847 = vadd.f32 %v845, %v846
    %v848 = vrot.slane %v847, 1
    %v849 = vadd.f32 %v847, %v848
    %v850 = vrcp.pop 2.0
    %v851 = vmul.f32 %v849, %v850
    %v852 = vsub.f32 %v837, %v851
    %v853 = vmul.f32 %v852, %v852
    %v854 = vsel %vm842, %v853, 0.0
    %v855 = vrot.slane %v854, 4
    %v856 = vadd.f32 %v854, %v855
    %v857 = vrot.slane %v856, 2
    %v858 = vadd.f32 %v856, %v857
    %v859 = vrot.slane %v858, 1
    %v860 = vadd.f32 %v858, %v859
    %v861 = vmul.f32 %v860, %v850
    %v862 = vld [vmem:[%s4] sm:$0x1]
    %v863 = vadd.f32 %v861, 1e-05
    %v864 = vrsqrt.pop %v863
    %v865 = vmul.f32 %v862, %v864
    %v866 = vld [vmem:[%s5] sm:$0x1]
    %v867 = vmul.f32 %v851, %v865
    %v868 = vsub.f32 %v866, %v867
    %v870 = vlaneseq
    %v871 = vshrl.u32 %v870, 7
    %v872 = vsub.s32 0, %v871
    %v873 = vrot.slane %v865, %v872
    %v875 = vmul.f32 %v837, %v873
    %v877 = vlaneseq
    %v878 = vshrl.u32 %v877, 7
    %v879 = vsub.s32 0, %v878
    %v880 = vrot.slane %v868, %v879
    %v882 = vadd.f32 %v875, %v880
    %v883 = vmax.f32 %v882, 0.0
    %v884 = vpack.c.bf16 %v883, %v883
    %v885 = vld [vmem:[%s6] sm:$0xf]
    %v886 = vld [vmem:[%s6 + $0x4] sm:$0xf]
    %v887 = vld [vmem:[%s6 + $0x8] sm:$0xf]
    %v888 = vld [vmem:[%s6 + $0xc] sm:$0xf]
    %v889 = vld [vmem:[%s7] sm:$0x1]
    %v891 = vlaneseq
    %v892 = vshrl.u32 %v891, 7
    %v893 = vsub.s32 0, %v892
    %v894 = vrot.slane %v889, %v893
    %v900 = vunpack.c.l.b16 %v885
    %v901 = vunpack.c.l.b16 %v886
    %v902 = vunpack.c.l.b16 %v887
    %v903 = vunpack.c.l.b16 %v888
    %v904 = vpack.c.b16 %v901, %v900
    %v905 = vpack.c.b16 %v903, %v902
    %vm908 = vcmask 261120
    %v910 = vsel %vm908, %v884, 0
    %912 = vmatprep.subr.bf16.mxu0 0
    %913 = vmatpush1.bf16.msra.mxu0 %v904
    %914 = vmatprep.subr.bf16.mxu0 0
    %915 = vmatpush1.bf16.msra.mxu0 %v905
    %916 = vmatprep.subr.bf16.mxu0 0
    %917 = vmatpush1.bf16.msra.mxu0 0
    %918 = vmatprep.subr.bf16.mxu0 0
    %919 = vmatpush1.bf16.msra.mxu0 0
    %920 = vmatprep.subr.bf16.mxu0 0
    %921 = vmatpush1.bf16.msra.mxu0 0
    %922 = vmatprep.subr.bf16.mxu0 0
    %923 = vmatpush1.bf16.msra.mxu0 0
    %924 = vmatprep.subr.bf16.mxu0 0
    %925 = vmatpush1.bf16.msra.mxu0 0
    %926 = vmatprep.subr.bf16.mxu0 0
    %927 = vmatpush1.bf16.msra.mxu0 0
    %928 = vmatprep.subr.bf16.mxu0 0
    %929 = vmatpush1.bf16.msra.mxu0 0
    %930 = vmatprep.subr.bf16.mxu0 0
    %931 = vmatpush1.bf16.msra.mxu0 0
    %932 = vmatprep.subr.bf16.mxu0 0
    %933 = vmatpush1.bf16.msra.mxu0 0
    %934 = vmatprep.subr.bf16.mxu0 0
    %935 = vmatpush1.bf16.msra.mxu0 0
    %936 = vmatprep.subr.bf16.mxu0 0
    %937 = vmatpush1.bf16.msra.mxu0 0
    %938 = vmatprep.subr.bf16.mxu0 0
    %939 = vmatpush1.bf16.msra.mxu0 0
    %940 = vmatprep.subr.bf16.mxu0 0
    %941 = vmatpush1.bf16.msra.mxu0 0
    %942 = vmatprep.subr.bf16.mxu0 0
    %943 = vmatpush1.bf16.msra.mxu0 0
    %944 = vmatprep.mubr.bf16.mxu0 0
    %945 = vmatmul.mubr.bf16.gmra.mrb[0].mxu0 %v910
    %v946 = vpop.f32.mrb[0].mxu0
    %v947 = vadd.f32 %v894, %v946
    %v948 = vpop.f32.mrb[0].mxu0
    %v949 = vpop.f32.mrb[0].mxu0
    %v950 = vpop.f32.mrb[0].mxu0
    %951 = vdwg.mxu0
    %952 = vst [vmem:[#allocation2] sm:$0x3] %v947
    // Predicated region
    $region34: #{tpu_custom_call.1} parent=1 // pred_check
      _
    $region35: #{tpu_custom_call.1} parent=1 // pred_check_branch
      %954 = sbr.rel (0) target = $region37
    $region36: #{tpu_custom_call.1} parent=1 // pred_region
      %s956 = ssub.s32 32, 32
      %957 = vsyncadd [#allocation3], %s956
      %s959 = sshll.u32 [#allocation2], 4
      %s960 = int_to_ptr.vmem [resolvable:$true] %s959
      %962 = dma.vmem_to_hbm [thread:$0]  %s960, 32, %s8, [#allocation3]
    $region37: #{tpu_custom_call.1} parent=1 // pred_fallthru
      _
    // Predicated region
    $region38: #{tpu_custom_call.1} parent=1 // pred_check
      _
    $region39: #{tpu_custom_call.1} parent=1 // pred_check_branch
      %964 = sbr.rel (0) target = $region41
    $region40: #{tpu_custom_call.1} parent=1 // pred_region
      %965 = dma.done [#allocation3], 32
    $region41: #{tpu_custom_call.1} parent=1 // pred_fallthru
      _
    %966 = vsyncpa [#allocation3], 1

</llo_original>
